<compile_context>
chip_gen: v7x
topology: tpu7x:2x2x1
jax: 0.10.0
libtpu: 0.0.40
codegen_flags: <defaults>
</compile_context>

<pallas_src>
import jax
import jax.numpy as jnp
from jax.experimental import pallas as pl
from jax.experimental.pallas import tpu as pltpu


def _cdiv(a, b):
    return -(-a // b)


def _round_up(a, m):
    return ((a + m - 1) // m) * m


def _classification_kernel(x_ref, w_ref, b_ref, o_ref):
    # x_ref: (TB, C, HW)  input dtype (f32 or bf16)
    # w_ref: (C, NP)      bf16, pre-transposed weight, pre-scaled by 1/(H*W)
    # b_ref: (1, NP)      f32 bias (zero-padded classes)
    # o_ref: (TB, NP)     f32 logits (zero-padded classes)
    #
    # Global average pool == spatial sum (the 1/(H*W) scale is folded into the
    # weight); accumulate the reduction in f32 regardless of input dtype.
    # TODO(synk): on v7x with a channels-last producer, take x as (TB, HW, C)
    # and reduce over the sublane axis to keep the XLU off the critical path.
    pooled = jnp.sum(x_ref[...], axis=-1, dtype=jnp.float32)            # (TB, C)
    logits = jnp.dot(pooled.astype(jnp.bfloat16), w_ref[...],           # single MXU pass
                     preferred_element_type=jnp.float32)                # (TB, NP)
    o_ref[...] = (logits + b_ref[...]).astype(o_ref.dtype)


def classification_forward(x_nchw, weight, bias):
    """x_nchw: (B, C, H, W); weight: (num_cls, C); bias: (num_cls,)."""
    B, C, H, W = x_nchw.shape
    num_cls = weight.shape[0]
    HW = H * W

    # Layout-only glue: flatten spatial dims so the kernel reduces the last axis.
    x_flat = x_nchw.reshape(B, C, HW)

    # Fold 1/(H*W) into the pre-transposed weight; keep it bf16 (single MXU pass,
    # half the VMEM residency). Pad classes to a lane-dense multiple of 128; the
    # padded columns are zero so padded logits are exactly 0 and get sliced off.
    NP = max(_round_up(num_cls, 128), 128)
    w_scaled = (weight.astype(jnp.float32).T / float(HW)).astype(jnp.bfloat16)  # (C, num_cls)
    w_pad = jnp.zeros((C, NP), dtype=jnp.bfloat16).at[:, :num_cls].set(w_scaled)
    b_pad = jnp.zeros((1, NP), dtype=jnp.float32).at[0, :num_cls].set(
        bias.astype(jnp.float32))

    # --- Generation-aware batch tiling ------------------------------------
    try:
        vmem_cap = int(pltpu.get_tpu_info().vmem_capacity_bytes)
    except Exception:
        vmem_cap = 128 * 1024 * 1024
    # Per-buffer x budget: stay well clear of v7x's 64 MiB VMEM; roofline
    # plateaus far below these tile sizes anyway.
    x_tile_budget = (10 << 20) if vmem_cap <= (64 << 20) else (24 << 20)

    itemsize = x_flat.dtype.itemsize
    per_row_bytes = C * HW * itemsize                    # bytes of x per batch element
    tb_mem = max(8, (x_tile_budget // max(per_row_bytes, 1)) // 8 * 8)
    tb_steps = max(8, _round_up(_cdiv(B, 4), 8))         # >= 4 grid steps for large B
    tb = min(tb_mem, tb_steps)
    if tb >= B:
        tb = B                                           # single block == full batch dim
    grid_steps = _cdiv(B, tb)
    grid = (grid_steps,)

    # Explicit VMEM limit: double-buffered x + out tiles, single-buffered
    # weight/bias (Buffered(1) below), plus compiler-scratch margin.
    vmem_needed = (2 * (tb * per_row_bytes + tb * NP * 4)
                   + C * NP * 2 + NP * 4)
    hard_cap = max(16 << 20, (vmem_cap * 3) // 4)
    vmem_limit = int(max(16 << 20, min(vmem_needed + (4 << 20), hard_cap)))

    # Advisory cost estimate: dominated by streaming x from HBM.
    cost = pl.CostEstimate(
        flops=int(B) * C * (HW + 2 * NP),
        transcendentals=0,
        bytes_accessed=int(B) * per_row_bytes + C * NP * 2 + NP * 4 + int(B) * NP * 4,
    )

    # Batch axis: core-parallel when there is more than one grid step (splits
    # streaming across v7x's two TensorCores); otherwise a plain serial axis.
    core_parallel = getattr(pltpu, "CORE_PARALLEL", pltpu.PARALLEL)
    dim_sem = (core_parallel,) if grid_steps > 1 else (pltpu.ARBITRARY,)

    # TODO(synk): if HW grows very large (high-res inputs), add a second
    # "arbitrary" reduction grid axis over HW with an f32 (TB, C) scratch
    # accumulator; for ConvMixer-scale HW a single spatial block is fine.
    out = pl.pallas_call(
        _classification_kernel,
        out_shape=jax.ShapeDtypeStruct((B, NP), jnp.float32),
        grid_spec=pltpu.PrefetchScalarGridSpec(
            num_scalar_prefetch=0,
            grid=grid,
            in_specs=[
                # Streamed, double-buffered x tile (ragged last block is masked).
                pl.BlockSpec((tb, C, HW), lambda i: (i, 0, 0)),
                # Grid-invariant operands: single-buffered, resident in VMEM.
                pl.BlockSpec((C, NP), lambda i: (0, 0),
                             pipeline_mode=pl.Buffered(1)),
                pl.BlockSpec((1, NP), lambda i: (0, 0),
                             pipeline_mode=pl.Buffered(1)),
            ],
            out_specs=pl.BlockSpec((tb, NP), lambda i: (i, 0)),
        ),
        compiler_params=pltpu.CompilerParams(
            dimension_semantics=dim_sem,
            vmem_limit_bytes=vmem_limit,
        ),
        cost_estimate=cost,
    )(x_flat, w_pad, b_pad)

    # Strip class padding (no batch padding was introduced).
    return out[:, :num_cls]


if __name__ == "__main__":
    # Small shapes consistent with the module: dim=32 channels, 16x16 spatial,
    # batch=2, num_cls=8.
    B, C, H, W = 2, 32, 16, 16
    num_cls = 8

    key = jax.random.PRNGKey(0)
    kx, kw, kb = jax.random.split(key, 3)

    x = jax.random.normal(kx, (B, C, H, W), dtype=jnp.float32)
    # nn.Linear parameters: weight (num_cls, dim), bias (num_cls,)
    weight = jax.random.normal(kw, (num_cls, C), dtype=jnp.float32) * 0.05
    bias = jax.random.normal(kb, (num_cls,), dtype=jnp.float32) * 0.01

    out = classification_forward(x, weight, bias)
    out = jax.block_until_ready(out)

    # Reference check in plain JAX (same math as the PyTorch module).
    pooled_ref = jnp.mean(x, axis=(2, 3))                 # (B, C)
    ref = pooled_ref @ weight.T + bias                    # (B, num_cls)
    assert out.shape == (B, num_cls)
    # bf16 weight / bf16 MXU operands -> relax tolerance slightly vs f32 ref.
    assert jnp.allclose(out, ref, atol=5e-3, rtol=1e-2)

    print("KERNEL_OK")
</pallas_src>

<mosaic_0001>
module attributes {stable_mosaic.version = 11 : i64} {
  func.func @_classification_kernel(%arg0: i32, %arg1: memref<2x32x256xf32, #tpu.memory_space<vmem>>, %arg2: memref<32x128xbf16, #tpu.memory_space<vmem>>, %arg3: memref<1x128xf32, #tpu.memory_space<vmem>>, %arg4: memref<2x128xf32, #tpu.memory_space<vmem>>) attributes {dimension_semantics = [#tpu.dimension_semantics<arbitrary>], iteration_bounds = array<i64: 1>, scalar_prefetch = 0 : i64, scratch_operands = 0 : i64, tpu.core_type = #tpu.core_type<tc>, window_params = [{transform_indices = @transform_0, window_bounds = array<i64: 2, 32, 256>}, {pipeline_mode = #tpu.pipeline_mode<synchronous>, transform_indices = @transform_1, window_bounds = array<i64: 32, 128>}, {pipeline_mode = #tpu.pipeline_mode<synchronous>, transform_indices = @transform_2, window_bounds = array<i64: 1, 128>}, {transform_indices = @transform_3, window_bounds = array<i64: 2, 128>}]} {
    %c0 = arith.constant 0 : index
    %c0_0 = arith.constant 0 : index
    %c0_1 = arith.constant 0 : index
    %0 = vector.load %arg1[%c0, %c0_0, %c0_1] : memref<2x32x256xf32, #tpu.memory_space<vmem>>, vector<2x32x256xf32>
    %cst = arith.constant dense<0.000000e+00> : vector<2x32xf32>
    %1 = vector.multi_reduction <add>, %0, %cst [2] : vector<2x32x256xf32> to vector<2x32xf32>
    %2 = arith.truncf %1 : vector<2x32xf32> to vector<2x32xbf16>
    %c0_2 = arith.constant 0 : index
    %c0_3 = arith.constant 0 : index
    %3 = vector.load %arg2[%c0_2, %c0_3] : memref<32x128xbf16, #tpu.memory_space<vmem>>, vector<32x128xbf16>
    %cst_4 = arith.constant dense<0.000000e+00> : vector<2x128xf32>
    %4 = tpu.matmul %2, %3, %cst_4 {dimension_numbers = #tpu.dot_dimension_numbers<[1], [0], [0], [1], [0, 0, 1, 1], [], []>} : vector<2x32xbf16>, vector<32x128xbf16>, vector<2x128xf32> -> vector<2x128xf32>
    %c0_5 = arith.constant 0 : index
    %c0_6 = arith.constant 0 : index
    %5 = vector.load %arg3[%c0_5, %c0_6] : memref<1x128xf32, #tpu.memory_space<vmem>>, vector<1x128xf32>
    %6 = vector.broadcast %5 : vector<1x128xf32> to vector<2x128xf32>
    %7 = arith.addf %4, %6 : vector<2x128xf32>
    %c0_7 = arith.constant 0 : index
    %c0_8 = arith.constant 0 : index
    %8 = vector.load %arg4[%c0_7, %c0_8] : memref<2x128xf32, #tpu.memory_space<vmem>>, vector<2x128xf32>
    tpu.vector_store %arg4[%c0_7, %c0_8], %7 {strides = array<i32>} : memref<2x128xf32, #tpu.memory_space<vmem>>, vector<2x128xf32>,
    return
  }
  func.func @transform_0(%arg0: i32) -> (i32, i32, i32) {
    %c0_i32 = arith.constant 0 : i32
    %c0_i32_0 = arith.constant 0 : i32
    %c0_i32_1 = arith.constant 0 : i32
    return %arg0, %c0_i32, %c0_i32_0 : i32, i32, i32
  }
  func.func @transform_1(%arg0: i32) -> (i32, i32) {
    %c0_i32 = arith.constant 0 : i32
    %c0_i32_0 = arith.constant 0 : i32
    %c0_i32_1 = arith.constant 0 : i32
    return %c0_i32, %c0_i32_0 : i32, i32
  }
  func.func @transform_2(%arg0: i32) -> (i32, i32) {
    %c0_i32 = arith.constant 0 : i32
    %c0_i32_0 = arith.constant 0 : i32
    %c0_i32_1 = arith.constant 0 : i32
    return %c0_i32, %c0_i32_0 : i32, i32
  }
  func.func @transform_3(%arg0: i32) -> (i32, i32) {
    %c0_i32 = arith.constant 0 : i32
    %c0_i32_0 = arith.constant 0 : i32
    return %arg0, %c0_i32 : i32, i32
  }
}

</mosaic_0001>

<llo_original>
// kernel: tpu_custom_call.1
$region0: #{tpu_custom_call.1}
  #allocation0 [shape = 'u32[]', space=smem, size = 0x4, offset = 0x4, fixed_abs, tag = 'smem constant byte address 0x4 - core index']
  #allocation1 [shape = 'u32[144,128]{1,0:T(1,128)}', space=vmem, size = 0x12000, scoped, tag = 'internal scratch']
  %s0 = inlined_call_operand.hbm [shape: f32[2,32,256], index: 0, kind: input, shape index: {}]
  %s1 = inlined_call_operand.hbm [shape: bf16[32,128], index: 1, kind: input, shape index: {}]
  %s2 = inlined_call_operand.vmem [shape: f32[1,128], index: 2, kind: input, shape index: {}]
  %s3 = inlined_call_operand.hbm [shape: f32[2,128], index: 3, kind: output, shape index: {}]
  %s4 = sld [smem:[#allocation0]]
  $region30: #{tpu_custom_call.1} parent=0
    _
  %s6 = ssub.s32 1, %s4
  %s7 = scalar_select 0, %s6, %s4
  $region1: #{tpu_custom_call.1} parent=0
    #allocation2 [shape = 'u8[65536]{0}', space=vmem, size = 0x10000, scoped, tag = 'input window, operand 0, single buffered']
    #allocation3 [shape = 's32[1]{0}', space=sflag, size = 0x4, scoped, tag = 'scoped memory for tpu_custom_call.1']
    #allocation4 [shape = 's32[1]{0}', space=sflag, size = 0x4, scoped, tag = 'scoped memory for tpu_custom_call.1']
    #allocation5 [shape = 'u8[8192]{0}', space=vmem, size = 0x2000, scoped, tag = 'input window, operand 1, single buffered']
    #allocation6 [shape = 's32[1]{0}', space=sflag, size = 0x4, scoped, tag = 'scoped memory for tpu_custom_call.1']
    #allocation7 [shape = 'u8[1024]{0}', space=vmem, size = 0x400, scoped, tag = 'output window, operand 0, single buffered']
    %8 = vsyncpa [#allocation3], 0
    %9 = vsyncpa [#allocation6], 0
    %10 = vsyncpa [#allocation4], 0
    // Predicated region
    $region2: #{tpu_custom_call.1} parent=1 // pred_check
      _
    $region3: #{tpu_custom_call.1} parent=1 // pred_check_branch
      %12 = sbr.rel (0) target = $region5
    $region4: #{tpu_custom_call.1} parent=1 // pred_region
      %s14 = ssub.s32 2048, 2048
      %15 = vsyncadd [#allocation3], %s14
      %s16 = sshll.u32 [#allocation2], 4
      %s17 = int_to_ptr.vmem [resolvable:$true] %s16
      %22 = dma.hbm_to_vmem [thread:$0]  %s0, 2048, %s17, [#allocation3], 256, 256, 16
    $region5: #{tpu_custom_call.1} parent=1 // pred_fallthru
      _
    // Predicated region
    $region6: #{tpu_custom_call.1} parent=1 // pred_check
      _
    $region7: #{tpu_custom_call.1} parent=1 // pred_check_branch
      %24 = sbr.rel (0) target = $region9
    $region8: #{tpu_custom_call.1} parent=1 // pred_region
      %s26 = ssub.s32 256, 256
      %27 = vsyncadd [#allocation6], %s26
      %s28 = sshll.u32 [#allocation5], 4
      %s29 = int_to_ptr.vmem [resolvable:$true] %s28
      %34 = dma.hbm_to_vmem [thread:$0]  %s1, 256, %s29, [#allocation6], 64, 64, 4
    $region9: #{tpu_custom_call.1} parent=1 // pred_fallthru
      _
    // Predicated region
    $region10: #{tpu_custom_call.1} parent=1 // pred_check
      _
    $region11: #{tpu_custom_call.1} parent=1 // pred_check_branch
      %36 = sbr.rel (0) target = $region13
    $region12: #{tpu_custom_call.1} parent=1 // pred_region
      _
    $region13: #{tpu_custom_call.1} parent=1 // pred_fallthru
      _
    // Predicated region
    $region14: #{tpu_custom_call.1} parent=1 // pred_check
      _
    $region15: #{tpu_custom_call.1} parent=1 // pred_check_branch
      %38 = sbr.rel (0) target = $region17
    $region16: #{tpu_custom_call.1} parent=1 // pred_region
      %39 = dma.done [#allocation3], 2048
    $region17: #{tpu_custom_call.1} parent=1 // pred_fallthru
      _
    // Predicated region
    $region18: #{tpu_custom_call.1} parent=1 // pred_check
      _
    $region19: #{tpu_custom_call.1} parent=1 // pred_check_branch
      %41 = sbr.rel (0) target = $region21
    $region20: #{tpu_custom_call.1} parent=1 // pred_region
      %42 = dma.done [#allocation6], 256
    $region21: #{tpu_custom_call.1} parent=1 // pred_fallthru
      _
    %v44 = vld [vmem:[#allocation2] sm:$0xff]
    %v45 = vld [vmem:[#allocation2 + $0x8] sm:$0xff]
    %v46 = vld [vmem:[#allocation2 + $0x10] sm:$0xff]
    %v47 = vld [vmem:[#allocation2 + $0x18] sm:$0xff]
    %v48 = vld [vmem:[#allocation2 + $0x20] sm:$0xff]
    %v49 = vld [vmem:[#allocation2 + $0x28] sm:$0xff]
    %v50 = vld [vmem:[#allocation2 + $0x30] sm:$0xff]
    %v51 = vld [vmem:[#allocation2 + $0x38] sm:$0xff]
    %v52 = vld [vmem:[#allocation2 + $0x40] sm:$0xff]
    %v53 = vld [vmem:[#allocation2 + $0x48] sm:$0xff]
    %v54 = vld [vmem:[#allocation2 + $0x50] sm:$0xff]
    %v55 = vld [vmem:[#allocation2 + $0x58] sm:$0xff]
    %v56 = vld [vmem:[#allocation2 + $0x60] sm:$0xff]
    %v57 = vld [vmem:[#allocation2 + $0x68] sm:$0xff]
    %v58 = vld [vmem:[#allocation2 + $0x70] sm:$0xff]
    %v59 = vld [vmem:[#allocation2 + $0x78] sm:$0xff]
    %v60 = vadd.f32 %v44, %v45
    %61 = vadd.xlane.f32.xlu0 %v60
    %v62 = vpop.xlane.xlu0 %61
    %v63 = vadd.f32 %v46, %v47
    %64 = vadd.xlane.f32.xlu0 %v63
    %v65 = vpop.xlane.xlu0 %64
    %v66 = vadd.f32 %v48, %v49
    %67 = vadd.xlane.f32.xlu0 %v66
    %v68 = vpop.xlane.xlu0 %67
    %v69 = vadd.f32 %v50, %v51
    %70 = vadd.xlane.f32.xlu0 %v69
    %v71 = vpop.xlane.xlu0 %70
    %v72 = vadd.f32 %v52, %v53
    %73 = vadd.xlane.f32.xlu0 %v72
    %v74 = vpop.xlane.xlu0 %73
    %v75 = vadd.f32 %v54, %v55
    %76 = vadd.xlane.f32.xlu0 %v75
    %v77 = vpop.xlane.xlu0 %76
    %v78 = vadd.f32 %v56, %v57
    %79 = vadd.xlane.f32.xlu0 %v78
    %v80 = vpop.xlane.xlu0 %79
    %v81 = vadd.f32 %v58, %v59
    %82 = vadd.xlane.f32.xlu0 %v81
    %v83 = vpop.xlane.xlu0 %82
    %v84 = vpack.c.bf16 %v65, %v62
    %v85 = vpack.c.bf16 %v71, %v68
    %v86 = vpack.c.bf16 %v77, %v74
    %v87 = vpack.c.bf16 %v83, %v80
    %v88 = vld [vmem:[#allocation5] sm:$0xf]
    %v89 = vld [vmem:[#allocation5 + $0x4] sm:$0xf]
    %v90 = vld [vmem:[#allocation5 + $0x8] sm:$0xf]
    %v91 = vld [vmem:[#allocation5 + $0xc] sm:$0xf]
    %v92 = vld [vmem:[%s2] sm:$0x1]
    %v94 = vlaneseq
    %v95 = vshrl.u32 %v94, 7
    %v96 = vsub.s32 0, %v95
    %v97 = vrot.slane %v92, %v96
    %v103 = vunpack.c.l.b16 %v84
    %v104 = vunpack.c.h.b16 %v84
    %v105 = vunpack.c.l.b16 %v85
    %v106 = vunpack.c.h.b16 %v85
    %v107 = vunpack.c.l.b16 %v86
    %v108 = vunpack.c.h.b16 %v86
    %v109 = vunpack.c.l.b16 %v87
    %v110 = vunpack.c.h.b16 %v87
    %v111 = vlaneseq
    %v112 = vand.u32 %v111, 127
    %v113 = vlaneseq
    %v114 = vshrl.u32 %v113, 7
    %v115 = vsub.s32 %v112, %v114
    %v116 = vrot.slane %v103, %v115
    %v117 = vadd.s32 %v112, 4294967288
    %v118 = vlaneseq
    %v119 = vshrl.u32 %v118, 7
    %v120 = vsub.s32 %v117, %v119
    %v121 = vrot.slane %v104, %v120
    %vm122 = vcmask 130112
    %v123 = vsel %vm122, %v121, %v116
    %v124 = vadd.s32 %v112, 4294967280
    %v125 = vlaneseq
    %v126 = vshrl.u32 %v125, 7
    %v127 = vsub.s32 %v124, %v126
    %v128 = vrot.slane %v105, %v127
    %vm129 = vcmask 195712
    %v130 = vsel %vm129, %v128, %v123
    %v131 = vadd.s32 %v112, 4294967272
    %v132 = vlaneseq
    %v133 = vshrl.u32 %v132, 7
    %v134 = vsub.s32 %v131, %v133
    %v135 = vrot.slane %v106, %v134
    %vm136 = vcmask 261312
    %v137 = vsel %vm136, %v135, %v130
    %v138 = vlaneseq
    %v139 = vshrl.u32 %v138, 7
    %v140 = vsub.s32 %v112, %v139
    %v141 = vrot.slane %v107, %v140
    %v142 = vlaneseq
    %v143 = vshrl.u32 %v142, 7
    %v144 = vsub.s32 %v117, %v143
    %v145 = vrot.slane %v108, %v144
    %v146 = vsel %vm122, %v145, %v141
    %v147 = vlaneseq
    %v148 = vshrl.u32 %v147, 7
    %v149 = vsub.s32 %v124, %v148
    %v150 = vrot.slane %v109, %v149
    %v151 = vsel %vm129, %v150, %v146
    %v152 = vlaneseq
    %v153 = vshrl.u32 %v152, 7
    %v154 = vsub.s32 %v131, %v153
    %v155 = vrot.slane %v110, %v154
    %v156 = vsel %vm136, %v155, %v151
    %vm157 = vcmask 1041409
    %v158 = vsel %vm157, %v156, %v137
    %v159 = vpack.c.b16 %v158, %v158
    %v164 = vunpack.c.l.b16 %v88
    %v165 = vunpack.c.l.b16 %v89
    %v166 = vunpack.c.l.b16 %v90
    %v167 = vunpack.c.l.b16 %v91
    %v168 = vpack.c.b16 %v165, %v164
    %v169 = vpack.c.b16 %v167, %v166
    %vm172 = vcmask 261120
    %v174 = vsel %vm172, %v159, 0
    %176 = vmatprep.subr.bf16.mxu0 0
    %177 = vmatpush1.bf16.msra.mxu0 %v168
    %178 = vmatprep.subr.bf16.mxu0 0
    %179 = vmatpush1.bf16.msra.mxu0 %v169
    %180 = vmatprep.subr.bf16.mxu0 0
    %181 = vmatpush1.bf16.msra.mxu0 0
    %182 = vmatprep.subr.bf16.mxu0 0
    %183 = vmatpush1.bf16.msra.mxu0 0
    %184 = vmatprep.subr.bf16.mxu0 0
    %185 = vmatpush1.bf16.msra.mxu0 0
    %186 = vmatprep.subr.bf16.mxu0 0
    %187 = vmatpush1.bf16.msra.mxu0 0
    %188 = vmatprep.subr.bf16.mxu0 0
    %189 = vmatpush1.bf16.msra.mxu0 0
    %190 = vmatprep.subr.bf16.mxu0 0
    %191 = vmatpush1.bf16.msra.mxu0 0
    %192 = vmatprep.subr.bf16.mxu0 0
    %193 = vmatpush1.bf16.msra.mxu0 0
    %194 = vmatprep.subr.bf16.mxu0 0
    %195 = vmatpush1.bf16.msra.mxu0 0
    %196 = vmatprep.subr.bf16.mxu0 0
    %197 = vmatpush1.bf16.msra.mxu0 0
    %198 = vmatprep.subr.bf16.mxu0 0
    %199 = vmatpush1.bf16.msra.mxu0 0
    %200 = vmatprep.subr.bf16.mxu0 0
    %201 = vmatpush1.bf16.msra.mxu0 0
    %202 = vmatprep.subr.bf16.mxu0 0
    %203 = vmatpush1.bf16.msra.mxu0 0
    %204 = vmatprep.subr.bf16.mxu0 0
    %205 = vmatpush1.bf16.msra.mxu0 0
    %206 = vmatprep.subr.bf16.mxu0 0
    %207 = vmatpush1.bf16.msra.mxu0 0
    %208 = vmatprep.mubr.bf16.mxu0 0
    %209 = vmatmul.mubr.bf16.gmra.mrb[0].mxu0 %v174
    %v210 = vpop.f32.mrb[0].mxu0
    %v211 = vadd.f32 %v97, %v210
    %v212 = vpop.f32.mrb[0].mxu0
    %v213 = vpop.f32.mrb[0].mxu0
    %v214 = vpop.f32.mrb[0].mxu0
    %215 = vdwg.mxu0
    %216 = vst [vmem:[#allocation7] sm:$0x3] %v211
    // Predicated region
    $region22: #{tpu_custom_call.1} parent=1 // pred_check
      _
    $region23: #{tpu_custom_call.1} parent=1 // pred_check_branch
      %218 = sbr.rel (0) target = $region25
    $region24: #{tpu_custom_call.1} parent=1 // pred_region
      %s220 = ssub.s32 32, 32
      %221 = vsyncadd [#allocation4], %s220
      %s223 = sshll.u32 [#allocation7], 4
      %s224 = int_to_ptr.vmem [resolvable:$true] %s223
      %226 = dma.vmem_to_hbm [thread:$0]  %s224, 32, %s3, [#allocation4]
    $region25: #{tpu_custom_call.1} parent=1 // pred_fallthru
      _
    // Predicated region
    $region26: #{tpu_custom_call.1} parent=1 // pred_check
      _
    $region27: #{tpu_custom_call.1} parent=1 // pred_check_branch
      %228 = sbr.rel (0) target = $region29
    $region28: #{tpu_custom_call.1} parent=1 // pred_region
      %229 = dma.done [#allocation4], 32
    $region29: #{tpu_custom_call.1} parent=1 // pred_fallthru
      _
    %230 = vsyncpa [#allocation3], 1
    %231 = vsyncpa [#allocation6], 1
    %232 = vsyncpa [#allocation4], 1

</llo_original>
